<compile_context>
chip_gen: v7x
topology: tpu7x:2x2x1
jax: 0.10.0
libtpu: 0.0.40
codegen_flags: <defaults>
</compile_context>

<pallas_src>
import jax
import jax.numpy as jnp
from jax.experimental import pallas as pl
from jax.experimental.pallas import tpu as pltpu

_HIGHEST = jax.lax.Precision.HIGHEST


def _affine_kernel(x_ref, w_ref, b_ref, o_ref):
    # x_ref: [T8, 16]  -- 8 batch rows packed per kernel row (lane-dense-ish)
    # w_ref: [16, 80]  -- block-diagonal folded weight, VMEM-resident
    # b_ref: [1, 80]   -- folded bias tiled 8x, VMEM-resident
    # o_ref: [T8, 80]  -- 8 output rows packed per kernel row
    acc = jnp.dot(x_ref[...], w_ref[...],
                  preferred_element_type=jnp.float32, precision=_HIGHEST)
    o_ref[...] = (acc + b_ref[...]).astype(o_ref.dtype)


def _round_up(a, b):
    return (a + b - 1) // b * b


def nn_projector_forward(x, w1, b1, w2, b2, *, tile_rows=32768,
                         min_pallas_rows=16384):
    """x: [N, 2]; w1: [50, 2]; b1: [50]; w2: [10, 50]; b2: [10] (PyTorch layout)."""
    n, in_dim = x.shape
    out_dim = w2.shape[0]

    # Exact fold of fc2(fc1(x)) (no activation between them):
    #   out = x @ (w2 @ w1).T + (w2 @ b1 + b2)
    w_fold_t = jnp.dot(w2, w1, precision=_HIGHEST).T.astype(jnp.float32)   # [2, 10]
    b_fold = (jnp.dot(w2, b1, precision=_HIGHEST) + b2).astype(jnp.float32)  # [10]

    # Small-N fast path: kernel launch + padding is pure overhead there.
    if n < min_pallas_rows:
        y = jnp.dot(x.astype(jnp.float32), w_fold_t, precision=_HIGHEST) + b_fold
        return y.astype(x.dtype)

    PACK = 8                      # batch rows packed per kernel row
    ALIGN = 64 * PACK             # 512-row alignment -> packed row-blocks are 8-divisible
    tile_rows = max(ALIGN, (int(tile_rows) // ALIGN) * ALIGN)

    n_pad = _round_up(n, ALIGN)
    # Keep >= 2 grid steps when possible so v7x's two TensorCores both get work.
    half = max(ALIGN, _round_up(n_pad // 2, ALIGN))
    tile = min(tile_rows, half)
    n_pad = _round_up(n_pad, tile)

    xf = x.astype(jnp.float32)
    if n_pad != n:
        xf = jnp.pad(xf, ((0, n_pad - n), (0, 0)))
    # Free, order-preserving reshape: [N_pad, 2] -> [N_pad/8, 16]
    x_packed = xf.reshape(n_pad // PACK, PACK * in_dim)

    # Block-diagonal folded weight/bias acting on packed rows:
    #   W_big[2p+k, 10q+o] = w_fold_t[k, o] iff q == p; b_big[0, 10q+o] = b_fold[o]
    eye = jnp.eye(PACK, dtype=jnp.float32)
    w_big = jnp.einsum("pq,ko->pkqo", eye, w_fold_t).reshape(
        PACK * in_dim, PACK * out_dim)                                  # [16, 80]
    b_big = jnp.tile(b_fold[None, :], (1, PACK))                        # [1, 80]

    t8 = tile // PACK
    grid = (n_pad // tile,)

    out_packed = pl.pallas_call(
        _affine_kernel,
        out_shape=jax.ShapeDtypeStruct((n_pad // PACK, PACK * out_dim), jnp.float32),
        grid=grid,
        in_specs=[
            pl.BlockSpec((t8, PACK * in_dim), lambda i: (i, 0)),        # streamed x tiles
            pl.BlockSpec((PACK * in_dim, PACK * out_dim), lambda i: (0, 0)),  # resident W
            pl.BlockSpec((1, PACK * out_dim), lambda i: (0, 0)),        # resident bias
        ],
        out_specs=pl.BlockSpec((t8, PACK * out_dim), lambda i: (i, 0)),
        compiler_params=pltpu.CompilerParams(
            dimension_semantics=("parallel",)),
        cost_estimate=pl.CostEstimate(
            flops=2 * (PACK * in_dim) * (PACK * out_dim) * (n_pad // PACK),
            transcendentals=0,
            bytes_accessed=4 * n_pad * (in_dim + out_dim)),
    )(x_packed, w_big, b_big)

    # Free reshape back to the native [N_pad, 10] layout; slice only if we padded.
    out = out_packed.reshape(n_pad, out_dim)
    if n_pad != n:
        out = out[:n]
    return out.astype(x.dtype)


def init_params(key):
    # Deterministic init mimicking nn.Linear default: U(-1/sqrt(fan_in), 1/sqrt(fan_in)).
    k1, k2, k3, k4 = jax.random.split(key, 4)
    lim1 = 1.0 / jnp.sqrt(2.0)
    lim2 = 1.0 / jnp.sqrt(50.0)
    w1 = jax.random.uniform(k1, (50, 2), jnp.float32, -lim1, lim1)
    b1 = jax.random.uniform(k2, (50,), jnp.float32, -lim1, lim1)
    w2 = jax.random.uniform(k3, (10, 50), jnp.float32, -lim2, lim2)
    b2 = jax.random.uniform(k4, (10,), jnp.float32, -lim2, lim2)
    return w1, b1, w2, b2


def _reference(x, w1, b1, w2, b2):
    # Same semantics as the PyTorch forward: fc2(fc1(x)), computed accurately.
    h = jnp.dot(x, w1.T, precision=_HIGHEST) + b1
    return jnp.dot(h, w2.T, precision=_HIGHEST) + b2


if __name__ == "__main__":
    key = jax.random.PRNGKey(0)
    kx1, kx2, kp = jax.random.split(key, 3)
    w1, b1, w2, b2 = init_params(kp)

    # 1) Tiny batch -> small-N XLA fast path.
    x_small = jax.random.normal(kx1, (8, 2), jnp.float32)
    y_small = jax.block_until_ready(nn_projector_forward(x_small, w1, b1, w2, b2))
    assert y_small.shape == (8, 10)
    assert jnp.allclose(y_small, _reference(x_small, w1, b1, w2, b2),
                        atol=1e-4, rtol=1e-4)

    # 2) Modest batch forced through the Pallas kernel (2 grid steps, no padding).
    x_big = jax.random.normal(kx2, (2048, 2), jnp.float32)
    y_big = jax.block_until_ready(
        nn_projector_forward(x_big, w1, b1, w2, b2, min_pallas_rows=0))
    assert y_big.shape == (2048, 10)
    assert jnp.allclose(y_big, _reference(x_big, w1, b1, w2, b2),
                        atol=1e-4, rtol=1e-4)

    print("KERNEL_OK")
</pallas_src>

<mosaic_0001>
module attributes {stable_mosaic.version = 11 : i64} {
  func.func @_affine_kernel(%arg0: i32, %arg1: memref<128x16xf32, #tpu.memory_space<vmem>>, %arg2: memref<16x80xf32, #tpu.memory_space<vmem>>, %arg3: memref<1x80xf32, #tpu.memory_space<vmem>>, %arg4: memref<128x80xf32, #tpu.memory_space<vmem>>) attributes {dimension_semantics = [#tpu.dimension_semantics<parallel>], iteration_bounds = array<i64: 2>, scalar_prefetch = 0 : i64, scratch_operands = 0 : i64, tpu.core_type = #tpu.core_type<tc>, window_params = [{transform_indices = @transform_0, window_bounds = array<i64: 128, 16>}, {pipeline_mode = #tpu.pipeline_mode<synchronous>, transform_indices = @transform_1, window_bounds = array<i64: 16, 80>}, {pipeline_mode = #tpu.pipeline_mode<synchronous>, transform_indices = @transform_2, window_bounds = array<i64: 1, 80>}, {transform_indices = @transform_3, window_bounds = array<i64: 128, 80>}]} {
    %c0 = arith.constant 0 : index
    %c0_0 = arith.constant 0 : index
    %0 = vector.load %arg1[%c0, %c0_0] : memref<128x16xf32, #tpu.memory_space<vmem>>, vector<128x16xf32>
    %c0_1 = arith.constant 0 : index
    %c0_2 = arith.constant 0 : index
    %1 = vector.load %arg2[%c0_1, %c0_2] : memref<16x80xf32, #tpu.memory_space<vmem>>, vector<16x80xf32>
    %cst = arith.constant dense<0.000000e+00> : vector<128x80xf32>
    %2 = tpu.matmul %0, %1, %cst {dimension_numbers = #tpu.dot_dimension_numbers<[1], [0], [0], [1], [0, 0, 1, 1], [], []>, precision = #tpu.contract_precision<fp32>} : vector<128x16xf32>, vector<16x80xf32>, vector<128x80xf32> -> vector<128x80xf32>
    %c0_3 = arith.constant 0 : index
    %c0_4 = arith.constant 0 : index
    %3 = vector.load %arg3[%c0_3, %c0_4] : memref<1x80xf32, #tpu.memory_space<vmem>>, vector<1x80xf32>
    %4 = vector.broadcast %3 : vector<1x80xf32> to vector<128x80xf32>
    %5 = arith.addf %2, %4 : vector<128x80xf32>
    %c0_5 = arith.constant 0 : index
    %c0_6 = arith.constant 0 : index
    %6 = vector.load %arg4[%c0_5, %c0_6] : memref<128x80xf32, #tpu.memory_space<vmem>>, vector<128x80xf32>
    tpu.vector_store %arg4[%c0_5, %c0_6], %5 {strides = array<i32>} : memref<128x80xf32, #tpu.memory_space<vmem>>, vector<128x80xf32>,
    return
  }
  func.func @transform_0(%arg0: i32) -> (i32, i32) {
    %c0_i32 = arith.constant 0 : i32
    %c0_i32_0 = arith.constant 0 : i32
    return %arg0, %c0_i32 : i32, i32
  }
  func.func @transform_1(%arg0: i32) -> (i32, i32) {
    %c0_i32 = arith.constant 0 : i32
    %c0_i32_0 = arith.constant 0 : i32
    %c0_i32_1 = arith.constant 0 : i32
    return %c0_i32, %c0_i32_0 : i32, i32
  }
  func.func @transform_2(%arg0: i32) -> (i32, i32) {
    %c0_i32 = arith.constant 0 : i32
    %c0_i32_0 = arith.constant 0 : i32
    %c0_i32_1 = arith.constant 0 : i32
    return %c0_i32, %c0_i32_0 : i32, i32
  }
  func.func @transform_3(%arg0: i32) -> (i32, i32) {
    %c0_i32 = arith.constant 0 : i32
    %c0_i32_0 = arith.constant 0 : i32
    return %arg0, %c0_i32 : i32, i32
  }
}

</mosaic_0001>

<llo_original>
// kernel: tpu_custom_call.1
$region0: #{tpu_custom_call.1}
  #allocation0 [shape = 'u32[]', space=smem, size = 0x4, offset = 0x4, fixed_abs, tag = 'smem constant byte address 0x4 - core index']
  #allocation1 [shape = 'u32[144,128]{1,0:T(1,128)}', space=vmem, size = 0x12000, scoped, tag = 'internal scratch']
  %s0 = inlined_call_operand.vmem [shape: f32[256,16], index: 0, kind: input, shape index: {}]
  %s1 = inlined_call_operand.vmem [shape: f32[16,80], index: 1, kind: input, shape index: {}]
  %s2 = inlined_call_operand.vmem [shape: f32[1,80], index: 2, kind: input, shape index: {}]
  %s3 = inlined_call_operand.vmem [shape: f32[256,80], index: 3, kind: output, shape index: {}]
  %s4 = sld [smem:[#allocation0]]
  $region45: #{tpu_custom_call.1} parent=0
    _
  %s6 = ssub.s32 1, %s4
  %s7 = scalar_select 0, %s6, %s4
  loop: start=0, step=1, limit=4
  $region2: #{tpu_custom_call.1} parent=0 // loop_pre_header
    _
  $region3: #{tpu_custom_call.1} parent=0 // loop_header
    %s9 = sphi 0, %s13
    %p10 = scmp.ge.s32.totalorder %s9, 4
    %s19 = sphi 0, %s21
    %s22 = sphi 0, %s19
    %s23 = sphi 0, %s22
    %s39 = sphi 0, %s23
    %s43 = sphi 0, %s43
    %s45 = sphi 0, %s43
    %s46 = sphi 0, %s45
    %s60 = sphi 0, %s46
    %s64 = sphi 0, %s64
    %s66 = sphi 0, %s64
    %s67 = sphi 0, %s66
    %s81 = sphi 0, %s67
    %s87 = sphi 0, %s89
    %s90 = sphi 0, %s87
    %s91 = sphi 0, %s90
    %s107 = sphi 0, %s91
  $region4: #{tpu_custom_call.1} parent=0 // loop_header_branch
    %12 = sbr.rel (%p10) target = $region8
  $region5: #{tpu_custom_call.1} parent=0 // loop_body
    %s14 = ssub.s32 %s9, 1
    %s15 = ssub.s32 %s9, 2
    %s16 = sadd.s32 %s9, 1
    %s17 = ssub.s32 %s9, %s16
    %p18 = scmp.eq.s32.totalorder %s17, 0
    %s20 = sadd.s32 %s19, 1
    %s21 = scalar_select %p18, %s19, %s20
    %p24 = pneg %p18
    %p25 = scmp.eq.s32.totalorder %s9, 1
    %p26 = por %p24, %p25
    %p27 = scmp.ne.s32.totalorder %s19, %s22
    %p28 = scmp.eq.s32.totalorder %s9, 0
    %p29 = por %p27, %p28
    %p30 = scmp.ne.s32.totalorder %s19, %s22
    %p31 = scmp.eq.s32.totalorder %s14, 1
    %p32 = por %p30, %p31
    %p33 = scmp.ne.s32.totalorder %s22, %s23
    %p34 = scmp.eq.s32.totalorder %s14, 0
    %p35 = por %p33, %p34
    %p36 = scmp.ne.s32.totalorder %s22, %s23
    %p37 = scmp.eq.s32.totalorder %s15, 1
    %p38 = por %p36, %p37
    %p40 = scmp.ne.s32.totalorder %s23, %s39
    %p41 = scmp.eq.s32.totalorder %s15, 0
    %p42 = por %p40, %p41
    %s44 = sadd.s32 %s43, 1
    %p47 = scmp.eq.s32.totalorder %s9, 1
    %p48 = scmp.ne.s32.totalorder %s43, %s45
    %p49 = scmp.eq.s32.totalorder %s9, 0
    %p50 = por %p48, %p49
    %p51 = scmp.ne.s32.totalorder %s43, %s45
    %p52 = scmp.eq.s32.totalorder %s14, 1
    %p53 = por %p51, %p52
    %p54 = scmp.ne.s32.totalorder %s45, %s46
    %p55 = scmp.eq.s32.totalorder %s14, 0
    %p56 = por %p54, %p55
    %p57 = scmp.ne.s32.totalorder %s45, %s46
    %p58 = scmp.eq.s32.totalorder %s15, 1
    %p59 = por %p57, %p58
    %p61 = scmp.ne.s32.totalorder %s46, %s60
    %p62 = scmp.eq.s32.totalorder %s15, 0
    %p63 = por %p61, %p62
    %s65 = sadd.s32 %s64, 1
    %p68 = scmp.eq.s32.totalorder %s9, 1
    %p69 = scmp.ne.s32.totalorder %s64, %s66
    %p70 = scmp.eq.s32.totalorder %s9, 0
    %p71 = por %p69, %p70
    %p72 = scmp.ne.s32.totalorder %s64, %s66
    %p73 = scmp.eq.s32.totalorder %s14, 1
    %p74 = por %p72, %p73
    %p75 = scmp.ne.s32.totalorder %s66, %s67
    %p76 = scmp.eq.s32.totalorder %s14, 0
    %p77 = por %p75, %p76
    %p78 = scmp.ne.s32.totalorder %s66, %s67
    %p79 = scmp.eq.s32.totalorder %s15, 1
    %p80 = por %p78, %p79
    %p82 = scmp.ne.s32.totalorder %s67, %s81
    %p83 = scmp.eq.s32.totalorder %s15, 0
    %p84 = por %p82, %p83
    %s85 = ssub.s32 %s9, %s16
    %p86 = scmp.eq.s32.totalorder %s85, 0
    %s88 = sadd.s32 %s87, 1
    %s89 = scalar_select %p86, %s87, %s88
    %p92 = pneg %p86
    %p93 = scmp.eq.s32.totalorder %s9, 1
    %p94 = por %p92, %p93
    %p95 = scmp.ne.s32.totalorder %s87, %s90
    %p96 = scmp.eq.s32.totalorder %s9, 0
    %p97 = por %p95, %p96
    %p98 = scmp.ne.s32.totalorder %s87, %s90
    %p99 = scmp.eq.s32.totalorder %s14, 1
    %p100 = por %p98, %p99
    %p101 = scmp.ne.s32.totalorder %s90, %s91
    %p102 = scmp.eq.s32.totalorder %s14, 0
    %p103 = por %p101, %p102
    %p104 = scmp.ne.s32.totalorder %s90, %s91
    %p105 = scmp.eq.s32.totalorder %s15, 1
    %p106 = por %p104, %p105
    %p108 = scmp.ne.s32.totalorder %s91, %s107
    %p109 = scmp.eq.s32.totalorder %s15, 0
    %p110 = por %p108, %p109
    %p111 = scmp.le.s32.totalorder 1, %s9
    %p112 = scmp.lt.s32.totalorder %s9, 3
    %p113 = pnand %p111, %p112
    %p114 = pneg %p113
    // Predicated region
    $region9: #{tpu_custom_call.1} parent=5 // pred_check
      _
    $region10: #{tpu_custom_call.1} parent=5 // pred_check_branch
      %116 = sbr.rel (%p113) target = $region12
    $region11: #{tpu_custom_call.1} parent=5 // pred_region
      %s117 = ssub.s32 %s9, 1
      // Predicated region
      $region13: #{tpu_custom_call.1} parent=11 // pred_check
        %p118 = pneg %p56
      $region14: #{tpu_custom_call.1} parent=11 // pred_check_branch
        %120 = sbr.rel (%p118) target = $region16
      $region15: #{tpu_custom_call.1} parent=11 // pred_region
        _
      $region16: #{tpu_custom_call.1} parent=11 // pred_fallthru
        _
      // Predicated region
      $region17: #{tpu_custom_call.1} parent=11 // pred_check
        %p121 = pneg %p77
      $region18: #{tpu_custom_call.1} parent=11 // pred_check_branch
        %123 = sbr.rel (%p121) target = $region20
      $region19: #{tpu_custom_call.1} parent=11 // pred_region
        _
      $region20: #{tpu_custom_call.1} parent=11 // pred_fallthru
        _
    $region12: #{tpu_custom_call.1} parent=5 // pred_fallthru
      _
    %p124 = scmp.lt.s32.totalorder %s9, 2
    // Predicated region
    $region21: #{tpu_custom_call.1} parent=5 // pred_check
      %p125 = pneg %p124
    $region22: #{tpu_custom_call.1} parent=5 // pred_check_branch
      %127 = sbr.rel (%p125) target = $region24
    $region23: #{tpu_custom_call.1} parent=5 // pred_region
      // Predicated region
      $region25: #{tpu_custom_call.1} parent=23 // pred_check
        %p128 = pneg %p29
      $region26: #{tpu_custom_call.1} parent=23 // pred_check_branch
        %130 = sbr.rel (%p128) target = $region28
      $region27: #{tpu_custom_call.1} parent=23 // pred_region
        %s131 = smul.u32 16, %s9
        %p132 = scmp.lt.s32.totalorder %s131, 31
        %s133 = scalar_select %p132, %s131, 31
        %s134 = smul.addr %s133, 8
        %s135 = scalar_lea.vmem %s0, %s134
        %s136 = smul.u32 16, %s9
      $region28: #{tpu_custom_call.1} parent=23 // pred_fallthru
        _
    $region24: #{tpu_custom_call.1} parent=5 // pred_fallthru
      _
    %p137 = scmp.le.s32.totalorder 1, %s9
    %p138 = scmp.lt.s32.totalorder %s9, 3
    %p139 = pnand %p137, %p138
    %p140 = pneg %p139
    // Predicated region
    $region29: #{tpu_custom_call.1} parent=5 // pred_check
      _
    $region30: #{tpu_custom_call.1} parent=5 // pred_check_branch
      %142 = sbr.rel (%p139) target = $region32
    $region31: #{tpu_custom_call.1} parent=5 // pred_region
      %s143 = ssub.s32 %s9, 1
      %s144 = smul.u32 16, %s14
      %p145 = scmp.lt.s32.totalorder %s144, 31
      %s146 = scalar_select %p145, %s144, 31
      %s147 = smul.addr %s146, 8
      %s148 = scalar_lea.vmem %s0, %s147
      %p149 = pneg %p35
      %p150 = pneg %p32
      %p151 = pneg %p56
      %p152 = pneg %p53
      %p153 = pneg %p77
      %p154 = pneg %p74
      %p155 = pneg %p103
      %p156 = pneg %p100
      %s157 = smul.u32 16, %s14
      %p158 = scmp.lt.s32.totalorder %s157, 31
      %s159 = scalar_select %p158, %s157, 31
      %s160 = smul.addr %s159, 8
      %s161 = scalar_lea.vmem %s3, %s160
      %s162 = smul.u32 16, %s14
      %p163 = scmp.lt.s32.totalorder %s162, 31
      %s164 = scalar_select %p163, %s162, 31
      %s165 = smul.addr %s164, 8
      %s166 = scalar_lea.vmem %s0, %s165
      %s167 = smul.u32 16, %s14
      %s168 = smul.u32 16, %s14
      %p169 = scmp.lt.s32.totalorder %s168, 31
      %s170 = scalar_select %p169, %s168, 31
      %s171 = smul.addr %s170, 8
      %s172 = scalar_lea.vmem %s3, %s171
      %s173 = smul.u32 16, %s14
      %v174 = vld [vmem:[%s166] sm:$0xff]
      %v175 = vld [vmem:[%s166 + $0x8] sm:$0xff]
      %v176 = vld [vmem:[%s166 + $0x10] sm:$0xff]
      %v177 = vld [vmem:[%s166 + $0x18] sm:$0xff]
      %v178 = vld [vmem:[%s166 + $0x20] sm:$0xff]
      %v179 = vld [vmem:[%s166 + $0x28] sm:$0xff]
      %v180 = vld [vmem:[%s166 + $0x30] sm:$0xff]
      %v181 = vld [vmem:[%s166 + $0x38] sm:$0xff]
      %v182 = vld [vmem:[%s166 + $0x40] sm:$0xff]
      %v183 = vld [vmem:[%s166 + $0x48] sm:$0xff]
      %v184 = vld [vmem:[%s166 + $0x50] sm:$0xff]
      %v185 = vld [vmem:[%s166 + $0x58] sm:$0xff]
      %v186 = vld [vmem:[%s166 + $0x60] sm:$0xff]
      %v187 = vld [vmem:[%s166 + $0x68] sm:$0xff]
      %v188 = vld [vmem:[%s166 + $0x70] sm:$0xff]
      %v189 = vld [vmem:[%s166 + $0x78] sm:$0xff]
      %v190 = vld [vmem:[%s1] sm:$0xff]
      %v191 = vld [vmem:[%s1 + $0x8] sm:$0xff]
      %v192 = vld [vmem:[%s2] sm:$0x1]
      %v194 = vlaneseq
      %v195 = vshrl.u32 %v194, 7
      %v196 = vsub.s32 0, %v195
      %v197 = vrot.slane %v192, %v196
      %vm199 = vcmask 130048
      %v201 = vsel %vm199, %v174, 0
      %v204 = vsel %vm199, %v175, 0
      %v207 = vsel %vm199, %v176, 0
      %v210 = vsel %vm199, %v177, 0
      %v213 = vsel %vm199, %v178, 0
      %v216 = vsel %vm199, %v179, 0
      %v219 = vsel %vm199, %v180, 0
      %v222 = vsel %vm199, %v181, 0
      %v225 = vsel %vm199, %v182, 0
      %v228 = vsel %vm199, %v183, 0
      %v231 = vsel %vm199, %v184, 0
      %v234 = vsel %vm199, %v185, 0
      %v237 = vsel %vm199, %v186, 0
      %v240 = vsel %vm199, %v187, 0
      %v243 = vsel %vm199, %v188, 0
      %v246 = vsel %vm199, %v189, 0
      %248 = vmatprep.subr.mxu0 0.0
      %v249 = vand.u32 %v190, 4294901760
      %250 = vmatpush1.msra.mxu0 %v249
      %251 = vmatprep.subr.mxu0 0.0
      %v252 = vand.u32 %v191, 4294901760
      %253 = vmatpush1.msra.mxu0 %v252
      %254 = vmatprep.subr.mxu0 0.0
      %255 = vmatpush1.msra.mxu0 0.0
      %256 = vmatprep.subr.mxu0 0.0
      %257 = vmatpush1.msra.mxu0 0.0
      %258 = vmatprep.subr.mxu0 0.0
      %259 = vmatpush1.msra.mxu0 0.0
      %260 = vmatprep.subr.mxu0 0.0
      %261 = vmatpush1.msra.mxu0 0.0
      %262 = vmatprep.subr.mxu0 0.0
      %263 = vmatpush1.msra.mxu0 0.0
      %264 = vmatprep.subr.mxu0 0.0
      %265 = vmatpush1.msra.mxu0 0.0
      %266 = vmatprep.subr.mxu0 0.0
      %267 = vmatpush1.msra.mxu0 0.0
      %268 = vmatprep.subr.mxu0 0.0
      %269 = vmatpush1.msra.mxu0 0.0
      %270 = vmatprep.subr.mxu0 0.0
      %271 = vmatpush1.msra.mxu0 0.0
      %272 = vmatprep.subr.mxu0 0.0
      %273 = vmatpush1.msra.mxu0 0.0
      %274 = vmatprep.subr.mxu0 0.0
      %275 = vmatpush1.msra.mxu0 0.0
      %276 = vmatprep.subr.mxu0 0.0
      %277 = vmatpush1.msra.mxu0 0.0
      %278 = vmatprep.subr.mxu0 0.0
      %279 = vmatpush1.msra.mxu0 0.0
      %280 = vmatprep.subr.mxu0 0.0
      %281 = vmatpush1.msra.mxu0 0.0
      %282 = vmatprep.subr.mxu0 0.0
      %283 = vmatpush1.msra.mxu0 0.0
      %284 = vmatprep.subr.mxu0 0.0
      %285 = vmatpush1.msra.mxu0 0.0
      %286 = vmatprep.subr.mxu0 0.0
      %287 = vmatpush1.msra.mxu0 0.0
      %288 = vmatprep.subr.mxu0 0.0
      %289 = vmatpush1.msra.mxu0 0.0
      %290 = vmatprep.subr.mxu0 0.0
      %291 = vmatpush1.msra.mxu0 0.0
      %292 = vmatprep.subr.mxu0 0.0
      %293 = vmatpush1.msra.mxu0 0.0
      %294 = vmatprep.subr.mxu0 0.0
      %295 = vmatpush1.msra.mxu0 0.0
      %296 = vmatprep.subr.mxu0 0.0
      %297 = vmatpush1.msra.mxu0 0.0
      %298 = vmatprep.subr.mxu0 0.0
      %299 = vmatpush1.msra.mxu0 0.0
      %300 = vmatprep.subr.mxu0 0.0
      %301 = vmatpush1.msra.mxu0 0.0
      %302 = vmatprep.subr.mxu0 0.0
      %303 = vmatpush1.msra.mxu0 0.0
      %304 = vmatprep.subr.mxu0 0.0
      %305 = vmatpush1.msra.mxu0 0.0
      %306 = vmatprep.subr.mxu0 0.0
      %307 = vmatpush1.msra.mxu0 0.0
      %308 = vmatprep.subr.mxu0 0.0
      %309 = vmatpush1.msra.mxu0 0.0
      %310 = vmatprep.subr.mxu0 0.0
      %311 = vmatpush1.msra.mxu0 0.0
      %312 = vmatprep.subr.mxu0 0.0
      %313 = vmatpush1.msra.mxu0 0.0
      %314 = vmatprep.mubr.f32.mxu0 0.0
      %v315 = vand.u32 %v201, 4294901760
      %v316 = vsub.f32 %v201, %v315
      %v317 = vand.u32 %v316, 4294901760
      %v318 = vsub.f32 %v316, %v317
      %v319 = vand.u32 %v318, 4294901760
      %320 = vmatmul.mubr.f32.gmra.mrb[0].mxu0 %v319
      %v321 = vpop.f32.mrb[0].mxu0
      %v322 = vadd.f32 %v197, %v321
      %v323 = vpop.f32.mrb[0].mxu0
      %324 = vmatprep.mubr.f32.mxu0 0.0
      %v325 = vand.u32 %v204, 4294901760
      %v326 = vsub.f32 %v204, %v325
      %v327 = vand.u32 %v326, 4294901760
      %v328 = vsub.f32 %v326, %v327
      %v329 = vand.u32 %v328, 4294901760
      %330 = vmatmul.mubr.f32.gmra.mrb[0].mxu0 %v329
      %v331 = vpop.f32.mrb[0].mxu0
      %v332 = vadd.f32 %v197, %v331
      %v333 = vpop.f32.mrb[0].mxu0
      %334 = vmatprep.mubr.f32.mxu0 0.0
      %v335 = vand.u32 %v207, 4294901760
      %v336 = vsub.f32 %v207, %v335
      %v337 = vand.u32 %v336, 4294901760
      %v338 = vsub.f32 %v336, %v337
      %v339 = vand.u32 %v338, 4294901760
      %340 = vmatmul.mubr.f32.gmra.mrb[0].mxu0 %v339
      %v341 = vpop.f32.mrb[0].mxu0
      %v342 = vadd.f32 %v197, %v341
      %v343 = vpop.f32.mrb[0].mxu0
      %344 = vmatprep.mubr.f32.mxu0 0.0
      %v345 = vand.u32 %v210, 4294901760
      %v346 = vsub.f32 %v210, %v345
      %v347 = vand.u32 %v346, 4294901760
      %v348 = vsub.f32 %v346, %v347
      %v349 = vand.u32 %v348, 4294901760
      %350 = vmatmul.mubr.f32.gmra.mrb[0].mxu0 %v349
      %v351 = vpop.f32.mrb[0].mxu0
      %v352 = vadd.f32 %v197, %v351
      %v353 = vpop.f32.mrb[0].mxu0
      %354 = vmatprep.mubr.f32.mxu0 0.0
      %v355 = vand.u32 %v213, 4294901760
      %v356 = vsub.f32 %v213, %v355
      %v357 = vand.u32 %v356, 4294901760
      %v358 = vsub.f32 %v356, %v357
      %v359 = vand.u32 %v358, 4294901760
      %360 = vmatmul.mubr.f32.gmra.mrb[0].mxu0 %v359
      %v361 = vpop.f32.mrb[0].mxu0
      %v362 = vadd.f32 %v197, %v361
      %v363 = vpop.f32.mrb[0].mxu0
      %364 = vmatprep.mubr.f32.mxu0 0.0
      %v365 = vand.u32 %v216, 4294901760
      %v366 = vsub.f32 %v216, %v365
      %v367 = vand.u32 %v366, 4294901760
      %v368 = vsub.f32 %v366, %v367
      %v369 = vand.u32 %v368, 4294901760
      %370 = vmatmul.mubr.f32.gmra.mrb[0].mxu0 %v369
      %v371 = vpop.f32.mrb[0].mxu0
      %v372 = vadd.f32 %v197, %v371
      %v373 = vpop.f32.mrb[0].mxu0
      %374 = vmatprep.mubr.f32.mxu0 0.0
      %v375 = vand.u32 %v219, 4294901760
      %v376 = vsub.f32 %v219, %v375
      %v377 = vand.u32 %v376, 4294901760
      %v378 = vsub.f32 %v376, %v377
      %v379 = vand.u32 %v378, 4294901760
      %380 = vmatmul.mubr.f32.gmra.mrb[0].mxu0 %v379
      %v381 = vpop.f32.mrb[0].mxu0
      %v382 = vadd.f32 %v197, %v381
      %v383 = vpop.f32.mrb[0].mxu0
      %384 = vmatprep.mubr.f32.mxu0 0.0
      %v385 = vand.u32 %v222, 4294901760
      %v386 = vsub.f32 %v222, %v385
      %v387 = vand.u32 %v386, 4294901760
      %v388 = vsub.f32 %v386, %v387
      %v389 = vand.u32 %v388, 4294901760
      %390 = vmatmul.mubr.f32.gmra.mrb[0].mxu0 %v389
      %v391 = vpop.f32.mrb[0].mxu0
      %v392 = vadd.f32 %v197, %v391
      %v393 = vpop.f32.mrb[0].mxu0
      %394 = vmatprep.mubr.f32.mxu0 0.0
      %v395 = vand.u32 %v225, 4294901760
      %v396 = vsub.f32 %v225, %v395
      %v397 = vand.u32 %v396, 4294901760
      %v398 = vsub.f32 %v396, %v397
      %v399 = vand.u32 %v398, 4294901760
      %400 = vmatmul.mubr.f32.gmra.mrb[0].mxu0 %v399
      %v401 = vpop.f32.mrb[0].mxu0
      %v402 = vadd.f32 %v197, %v401
      %v403 = vpop.f32.mrb[0].mxu0
      %404 = vmatprep.mubr.f32.mxu0 0.0
      %v405 = vand.u32 %v228, 4294901760
      %v406 = vsub.f32 %v228, %v405
      %v407 = vand.u32 %v406, 4294901760
      %v408 = vsub.f32 %v406, %v407
      %v409 = vand.u32 %v408, 4294901760
      %410 = vmatmul.mubr.f32.gmra.mrb[0].mxu0 %v409
      %v411 = vpop.f32.mrb[0].mxu0
      %v412 = vadd.f32 %v197, %v411
      %v413 = vpop.f32.mrb[0].mxu0
      %414 = vmatprep.mubr.f32.mxu0 0.0
      %v415 = vand.u32 %v231, 4294901760
      %v416 = vsub.f32 %v231, %v415
      %v417 = vand.u32 %v416, 4294901760
      %v418 = vsub.f32 %v416, %v417
      %v419 = vand.u32 %v418, 4294901760
      %420 = vmatmul.mubr.f32.gmra.mrb[0].mxu0 %v419
      %v421 = vpop.f32.mrb[0].mxu0
      %v422 = vadd.f32 %v197, %v421
      %v423 = vpop.f32.mrb[0].mxu0
      %424 = vmatprep.mubr.f32.mxu0 0.0
      %v425 = vand.u32 %v234, 4294901760
      %v426 = vsub.f32 %v234, %v425
      %v427 = vand.u32 %v426, 4294901760
      %v428 = vsub.f32 %v426, %v427
      %v429 = vand.u32 %v428, 4294901760
      %430 = vmatmul.mubr.f32.gmra.mrb[0].mxu0 %v429
      %v431 = vpop.f32.mrb[0].mxu0
      %v432 = vadd.f32 %v197, %v431
      %v433 = vpop.f32.mrb[0].mxu0
      %434 = vmatprep.mubr.f32.mxu0 0.0
      %v435 = vand.u32 %v237, 4294901760
      %v436 = vsub.f32 %v237, %v435
      %v437 = vand.u32 %v436, 4294901760
      %v438 = vsub.f32 %v436, %v437
      %v439 = vand.u32 %v438, 4294901760
      %440 = vmatmul.mubr.f32.gmra.mrb[0].mxu0 %v439
      %v441 = vpop.f32.mrb[0].mxu0
      %v442 = vadd.f32 %v197, %v441
      %v443 = vpop.f32.mrb[0].mxu0
      %444 = vmatprep.mubr.f32.mxu0 0.0
      %v445 = vand.u32 %v240, 4294901760
      %v446 = vsub.f32 %v240, %v445
      %v447 = vand.u32 %v446, 4294901760
      %v448 = vsub.f32 %v446, %v447
      %v449 = vand.u32 %v448, 4294901760
      %450 = vmatmul.mubr.f32.gmra.mrb[0].mxu0 %v449
      %v451 = vpop.f32.mrb[0].mxu0
      %v452 = vadd.f32 %v197, %v451
      %v453 = vpop.f32.mrb[0].mxu0
      %454 = vmatprep.mubr.f32.mxu0 0.0
      %v455 = vand.u32 %v243, 4294901760
      %v456 = vsub.f32 %v243, %v455
      %v457 = vand.u32 %v456, 4294901760
      %v458 = vsub.f32 %v456, %v457
      %v459 = vand.u32 %v458, 4294901760
      %460 = vmatmul.mubr.f32.gmra.mrb[0].mxu0 %v459
      %v461 = vpop.f32.mrb[0].mxu0
      %v462 = vadd.f32 %v197, %v461
      %v463 = vpop.f32.mrb[0].mxu0
      %464 = vmatprep.mubr.f32.mxu0 0.0
      %v465 = vand.u32 %v246, 4294901760
      %v466 = vsub.f32 %v246, %v465
      %v467 = vand.u32 %v466, 4294901760
      %v468 = vsub.f32 %v466, %v467
      %v469 = vand.u32 %v468, 4294901760
      %470 = vmatmul.mubr.f32.gmra.mrb[0].mxu0 %v469
      %v471 = vpop.f32.mrb[0].mxu0
      %v472 = vadd.f32 %v197, %v471
      %v473 = vpop.f32.mrb[0].mxu0
      %474 = vdwg.mxu0
      %475 = vmatprep.subr.mxu0 0.0
      %v476 = vand.u32 %v190, 4294901760
      %v477 = vsub.f32 %v190, %v476
      %v478 = vand.u32 %v477, 4294901760
      %v479 = vsub.f32 %v477, %v478
      %v480 = vand.u32 %v479, 4294901760
      %481 = vmatpush1.msra.mxu0 %v480
      %482 = vmatprep.subr.mxu0 0.0
      %v483 = vand.u32 %v191, 4294901760
      %v484 = vsub.f32 %v191, %v483
      %v485 = vand.u32 %v484, 4294901760
      %v486 = vsub.f32 %v484, %v485
      %v487 = vand.u32 %v486, 4294901760
      %488 = vmatpush1.msra.mxu0 %v487
      %489 = vmatprep.subr.mxu0 0.0
      %490 = vmatpush1.msra.mxu0 0.0
      %491 = vmatprep.subr.mxu0 0.0
      %492 = vmatpush1.msra.mxu0 0.0
      %493 = vmatprep.subr.mxu0 0.0
      %494 = vmatpush1.msra.mxu0 0.0
      %495 = vmatprep.subr.mxu0 0.0
      %496 = vmatpush1.msra.mxu0 0.0
      %497 = vmatprep.subr.mxu0 0.0
      %498 = vmatpush1.msra.mxu0 0.0
      %499 = vmatprep.subr.mxu0 0.0
      %500 = vmatpush1.msra.mxu0 0.0
      %501 = vmatprep.subr.mxu0 0.0
      %502 = vmatpush1.msra.mxu0 0.0
      %503 = vmatprep.subr.mxu0 0.0
      %504 = vmatpush1.msra.mxu0 0.0
      %505 = vmatprep.subr.mxu0 0.0
      %506 = vmatpush1.msra.mxu0 0.0
      %507 = vmatprep.subr.mxu0 0.0
      %508 = vmatpush1.msra.mxu0 0.0
      %509 = vmatprep.subr.mxu0 0.0
      %510 = vmatpush1.msra.mxu0 0.0
      %511 = vmatprep.subr.mxu0 0.0
      %512 = vmatpush1.msra.mxu0 0.0
      %513 = vmatprep.subr.mxu0 0.0
      %514 = vmatpush1.msra.mxu0 0.0
      %515 = vmatprep.subr.mxu0 0.0
      %516 = vmatpush1.msra.mxu0 0.0
      %517 = vmatprep.subr.mxu0 0.0
      %518 = vmatpush1.msra.mxu0 0.0
      %519 = vmatprep.subr.mxu0 0.0
      %520 = vmatpush1.msra.mxu0 0.0
      %521 = vmatprep.subr.mxu0 0.0
      %522 = vmatpush1.msra.mxu0 0.0
      %523 = vmatprep.subr.mxu0 0.0
      %524 = vmatpush1.msra.mxu0 0.0
      %525 = vmatprep.subr.mxu0 0.0
      %526 = vmatpush1.msra.mxu0 0.0
      %527 = vmatprep.subr.mxu0 0.0
      %528 = vmatpush1.msra.mxu0 0.0
      %529 = vmatprep.subr.mxu0 0.0
      %530 = vmatpush1.msra.mxu0 0.0
      %531 = vmatprep.subr.mxu0 0.0
      %532 = vmatpush1.msra.mxu0 0.0
      %533 = vmatprep.subr.mxu0 0.0
      %534 = vmatpush1.msra.mxu0 0.0
      %535 = vmatprep.subr.mxu0 0.0
      %536 = vmatpush1.msra.mxu0 0.0
      %537 = vmatprep.subr.mxu0 0.0
      %538 = vmatpush1.msra.mxu0 0.0
      %539 = vmatprep.subr.mxu0 0.0
      %540 = vmatpush1.msra.mxu0 0.0
      %541 = vmatprep.subr.mxu0 0.0
      %542 = vmatpush1.msra.mxu0 0.0
      %543 = vmatprep.subr.mxu0 0.0
      %544 = vmatpush1.msra.mxu0 0.0
      %545 = vmatprep.subr.mxu0 0.0
      %546 = vmatpush1.msra.mxu0 0.0
      %547 = vmatprep.subr.mxu0 0.0
      %548 = vmatpush1.msra.mxu0 0.0
      %549 = vmatprep.mubr.f32.mxu0 0.0
      %v550 = vand.u32 %v201, 4294901760
      %551 = vmatmul.mubr.f32.gmra.mrb[0].mxu0 %v550
      %v552 = vpop.f32.mrb[0].mxu0
      %v553 = vadd.f32 %v322, %v552
      %v554 = vpop.f32.mrb[0].mxu0
      %555 = vmatprep.mubr.f32.mxu0 0.0
      %v556 = vand.u32 %v204, 4294901760
      %557 = vmatmul.mubr.f32.gmra.mrb[0].mxu0 %v556
      %v558 = vpop.f32.mrb[0].mxu0
      %v559 = vadd.f32 %v332, %v558
      %v560 = vpop.f32.mrb[0].mxu0
      %561 = vmatprep.mubr.f32.mxu0 0.0
      %v562 = vand.u32 %v207, 4294901760
      %563 = vmatmul.mubr.f32.gmra.mrb[0].mxu0 %v562
      %v564 = vpop.f32.mrb[0].mxu0
      %v565 = vadd.f32 %v342, %v564
      %v566 = vpop.f32.mrb[0].mxu0
      %567 = vmatprep.mubr.f32.mxu0 0.0
      %v568 = vand.u32 %v210, 4294901760
      %569 = vmatmul.mubr.f32.gmra.mrb[0].mxu0 %v568
      %v570 = vpop.f32.mrb[0].mxu0
      %v571 = vadd.f32 %v352, %v570
      %v572 = vpop.f32.mrb[0].mxu0
      %573 = vmatprep.mubr.f32.mxu0 0.0
      %v574 = vand.u32 %v213, 4294901760
      %575 = vmatmul.mubr.f32.gmra.mrb[0].mxu0 %v574
      %v576 = vpop.f32.mrb[0].mxu0
      %v577 = vadd.f32 %v362, %v576
      %v578 = vpop.f32.mrb[0].mxu0
      %579 = vmatprep.mubr.f32.mxu0 0.0
      %v580 = vand.u32 %v216, 4294901760
      %581 = vmatmul.mubr.f32.gmra.mrb[0].mxu0 %v580
      %v582 = vpop.f32.mrb[0].mxu0
      %v583 = vadd.f32 %v372, %v582
      %v584 = vpop.f32.mrb[0].mxu0
      %585 = vmatprep.mubr.f32.mxu0 0.0
      %v586 = vand.u32 %v219, 4294901760
      %587 = vmatmul.mubr.f32.gmra.mrb[0].mxu0 %v586
      %v588 = vpop.f32.mrb[0].mxu0
      %v589 = vadd.f32 %v382, %v588
      %v590 = vpop.f32.mrb[0].mxu0
      %591 = vmatprep.mubr.f32.mxu0 0.0
      %v592 = vand.u32 %v222, 4294901760
      %593 = vmatmul.mubr.f32.gmra.mrb[0].mxu0 %v592
      %v594 = vpop.f32.mrb[0].mxu0
      %v595 = vadd.f32 %v392, %v594
      %v596 = vpop.f32.mrb[0].mxu0
      %597 = vmatprep.mubr.f32.mxu0 0.0
      %v598 = vand.u32 %v225, 4294901760
      %599 = vmatmul.mubr.f32.gmra.mrb[0].mxu0 %v598
      %v600 = vpop.f32.mrb[0].mxu0
      %v601 = vadd.f32 %v402, %v600
      %v602 = vpop.f32.mrb[0].mxu0
      %603 = vmatprep.mubr.f32.mxu0 0.0
      %v604 = vand.u32 %v228, 4294901760
      %605 = vmatmul.mubr.f32.gmra.mrb[0].mxu0 %v604
      %v606 = vpop.f32.mrb[0].mxu0
      %v607 = vadd.f32 %v412, %v606
      %v608 = vpop.f32.mrb[0].mxu0
      %609 = vmatprep.mubr.f32.mxu0 0.0
      %v610 = vand.u32 %v231, 4294901760
      %611 = vmatmul.mubr.f32.gmra.mrb[0].mxu0 %v610
      %v612 = vpop.f32.mrb[0].mxu0
      %v613 = vadd.f32 %v422, %v612
      %v614 = vpop.f32.mrb[0].mxu0
      %615 = vmatprep.mubr.f32.mxu0 0.0
      %v616 = vand.u32 %v234, 4294901760
      %617 = vmatmul.mubr.f32.gmra.mrb[0].mxu0 %v616
      %v618 = vpop.f32.mrb[0].mxu0
      %v619 = vadd.f32 %v432, %v618
      %v620 = vpop.f32.mrb[0].mxu0
      %621 = vmatprep.mubr.f32.mxu0 0.0
      %v622 = vand.u32 %v237, 4294901760
      %623 = vmatmul.mubr.f32.gmra.mrb[0].mxu0 %v622
      %v624 = vpop.f32.mrb[0].mxu0
      %v625 = vadd.f32 %v442, %v624
      %v626 = vpop.f32.mrb[0].mxu0
      %627 = vmatprep.mubr.f32.mxu0 0.0
      %v628 = vand.u32 %v240, 4294901760
      %629 = vmatmul.mubr.f32.gmra.mrb[0].mxu0 %v628
      %v630 = vpop.f32.mrb[0].mxu0
      %v631 = vadd.f32 %v452, %v630
      %v632 = vpop.f32.mrb[0].mxu0
      %633 = vmatprep.mubr.f32.mxu0 0.0
      %v634 = vand.u32 %v243, 4294901760
      %635 = vmatmul.mubr.f32.gmra.mrb[0].mxu0 %v634
      %v636 = vpop.f32.mrb[0].mxu0
      %v637 = vadd.f32 %v462, %v636
      %v638 = vpop.f32.mrb[0].mxu0
      %639 = vmatprep.mubr.f32.mxu0 0.0
      %v640 = vand.u32 %v246, 4294901760
      %641 = vmatmul.mubr.f32.gmra.mrb[0].mxu0 %v640
      %v642 = vpop.f32.mrb[0].mxu0
      %v643 = vadd.f32 %v472, %v642
      %v644 = vpop.f32.mrb[0].mxu0
      %645 = vdwg.mxu0
      %646 = vmatprep.subr.mxu0 0.0
      %v647 = vand.u32 %v190, 4294901760
      %v648 = vsub.f32 %v190, %v647
      %649 = vmatpush1.msra.mxu0 %v648
      %650 = vmatprep.subr.mxu0 0.0
      %v651 = vand.u32 %v191, 4294901760
      %v652 = vsub.f32 %v191, %v651
      %653 = vmatpush1.msra.mxu0 %v652
      %654 = vmatprep.subr.mxu0 0.0
      %655 = vmatpush1.msra.mxu0 0.0
      %656 = vmatprep.subr.mxu0 0.0
      %657 = vmatpush1.msra.mxu0 0.0
      %658 = vmatprep.subr.mxu0 0.0
      %659 = vmatpush1.msra.mxu0 0.0
      %660 = vmatprep.subr.mxu0 0.0
      %661 = vmatpush1.msra.mxu0 0.0
      %662 = vmatprep.subr.mxu0 0.0
      %663 = vmatpush1.msra.mxu0 0.0
      %664 = vmatprep.subr.mxu0 0.0
      %665 = vmatpush1.msra.mxu0 0.0
      %666 = vmatprep.subr.mxu0 0.0
      %667 = vmatpush1.msra.mxu0 0.0
      %668 = vmatprep.subr.mxu0 0.0
      %669 = vmatpush1.msra.mxu0 0.0
      %670 = vmatprep.subr.mxu0 0.0
      %671 = vmatpush1.msra.mxu0 0.0
      %672 = vmatprep.subr.mxu0 0.0
      %673 = vmatpush1.msra.mxu0 0.0
      %674 = vmatprep.subr.mxu0 0.0
      %675 = vmatpush1.msra.mxu0 0.0
      %676 = vmatprep.subr.mxu0 0.0
      %677 = vmatpush1.msra.mxu0 0.0
      %678 = vmatprep.subr.mxu0 0.0
      %679 = vmatpush1.msra.mxu0 0.0
      %680 = vmatprep.subr.mxu0 0.0
      %681 = vmatpush1.msra.mxu0 0.0
      %682 = vmatprep.subr.mxu0 0.0
      %683 = vmatpush1.msra.mxu0 0.0
      %684 = vmatprep.subr.mxu0 0.0
      %685 = vmatpush1.msra.mxu0 0.0
      %686 = vmatprep.subr.mxu0 0.0
      %687 = vmatpush1.msra.mxu0 0.0
      %688 = vmatprep.subr.mxu0 0.0
      %689 = vmatpush1.msra.mxu0 0.0
      %690 = vmatprep.subr.mxu0 0.0
      %691 = vmatpush1.msra.mxu0 0.0
      %692 = vmatprep.subr.mxu0 0.0
      %693 = vmatpush1.msra.mxu0 0.0
      %694 = vmatprep.subr.mxu0 0.0
      %695 = vmatpush1.msra.mxu0 0.0
      %696 = vmatprep.subr.mxu0 0.0
      %697 = vmatpush1.msra.mxu0 0.0
      %698 = vmatprep.subr.mxu0 0.0
      %699 = vmatpush1.msra.mxu0 0.0
      %700 = vmatprep.subr.mxu0 0.0
      %701 = vmatpush1.msra.mxu0 0.0
      %702 = vmatprep.subr.mxu0 0.0
      %703 = vmatpush1.msra.mxu0 0.0
      %704 = vmatprep.subr.mxu0 0.0
      %705 = vmatpush1.msra.mxu0 0.0
      %706 = vmatprep.subr.mxu0 0.0
      %707 = vmatpush1.msra.mxu0 0.0
      %708 = vmatprep.subr.mxu0 0.0
      %709 = vmatpush1.msra.mxu0 0.0
      %710 = vmatprep.subr.mxu0 0.0
      %711 = vmatpush1.msra.mxu0 0.0
      %712 = vmatprep.subr.mxu0 0.0
      %713 = vmatpush1.msra.mxu0 0.0
      %714 = vmatprep.mubr.f32.mxu0 0.0
      %v715 = vand.u32 %v201, 4294901760
      %v716 = vsub.f32 %v201, %v715
      %717 = vmatmul.mubr.f32.gmra.mrb[0].mxu0 %v716
      %v718 = vpop.f32.mrb[0].mxu0
      %v719 = vadd.f32 %v553, %v718
      %v720 = vpop.f32.mrb[0].mxu0
      %721 = vmatprep.mubr.f32.mxu0 0.0
      %v722 = vand.u32 %v204, 4294901760
      %v723 = vsub.f32 %v204, %v722
      %724 = vmatmul.mubr.f32.gmra.mrb[0].mxu0 %v723
      %v725 = vpop.f32.mrb[0].mxu0
      %v726 = vadd.f32 %v559, %v725
      %v727 = vpop.f32.mrb[0].mxu0
      %728 = vmatprep.mubr.f32.mxu0 0.0
      %v729 = vand.u32 %v207, 4294901760
      %v730 = vsub.f32 %v207, %v729
      %731 = vmatmul.mubr.f32.gmra.mrb[0].mxu0 %v730
      %v732 = vpop.f32.mrb[0].mxu0
      %v733 = vadd.f32 %v565, %v732
      %v734 = vpop.f32.mrb[0].mxu0
      %735 = vmatprep.mubr.f32.mxu0 0.0
      %v736 = vand.u32 %v210, 4294901760
      %v737 = vsub.f32 %v210, %v736
      %738 = vmatmul.mubr.f32.gmra.mrb[0].mxu0 %v737
      %v739 = vpop.f32.mrb[0].mxu0
      %v740 = vadd.f32 %v571, %v739
      %v741 = vpop.f32.mrb[0].mxu0
      %742 = vmatprep.mubr.f32.mxu0 0.0
      %v743 = vand.u32 %v213, 4294901760
      %v744 = vsub.f32 %v213, %v743
      %745 = vmatmul.mubr.f32.gmra.mrb[0].mxu0 %v744
      %v746 = vpop.f32.mrb[0].mxu0
      %v747 = vadd.f32 %v577, %v746
      %v748 = vpop.f32.mrb[0].mxu0
      %749 = vmatprep.mubr.f32.mxu0 0.0
      %v750 = vand.u32 %v216, 4294901760
      %v751 = vsub.f32 %v216, %v750
      %752 = vmatmul.mubr.f32.gmra.mrb[0].mxu0 %v751
      %v753 = vpop.f32.mrb[0].mxu0
      %v754 = vadd.f32 %v583, %v753
      %v755 = vpop.f32.mrb[0].mxu0
      %756 = vmatprep.mubr.f32.mxu0 0.0
      %v757 = vand.u32 %v219, 4294901760
      %v758 = vsub.f32 %v219, %v757
      %759 = vmatmul.mubr.f32.gmra.mrb[0].mxu0 %v758
      %v760 = vpop.f32.mrb[0].mxu0
      %v761 = vadd.f32 %v589, %v760
      %v762 = vpop.f32.mrb[0].mxu0
      %763 = vmatprep.mubr.f32.mxu0 0.0
      %v764 = vand.u32 %v222, 4294901760
      %v765 = vsub.f32 %v222, %v764
      %766 = vmatmul.mubr.f32.gmra.mrb[0].mxu0 %v765
      %v767 = vpop.f32.mrb[0].mxu0
      %v768 = vadd.f32 %v595, %v767
      %v769 = vpop.f32.mrb[0].mxu0
      %770 = vmatprep.mubr.f32.mxu0 0.0
      %v771 = vand.u32 %v225, 4294901760
      %v772 = vsub.f32 %v225, %v771
      %773 = vmatmul.mubr.f32.gmra.mrb[0].mxu0 %v772
      %v774 = vpop.f32.mrb[0].mxu0
      %v775 = vadd.f32 %v601, %v774
      %v776 = vpop.f32.mrb[0].mxu0
      %777 = vmatprep.mubr.f32.mxu0 0.0
      %v778 = vand.u32 %v228, 4294901760
      %v779 = vsub.f32 %v228, %v778
      %780 = vmatmul.mubr.f32.gmra.mrb[0].mxu0 %v779
      %v781 = vpop.f32.mrb[0].mxu0
      %v782 = vadd.f32 %v607, %v781
      %v783 = vpop.f32.mrb[0].mxu0
      %784 = vmatprep.mubr.f32.mxu0 0.0
      %v785 = vand.u32 %v231, 4294901760
      %v786 = vsub.f32 %v231, %v785
      %787 = vmatmul.mubr.f32.gmra.mrb[0].mxu0 %v786
      %v788 = vpop.f32.mrb[0].mxu0
      %v789 = vadd.f32 %v613, %v788
      %v790 = vpop.f32.mrb[0].mxu0
      %791 = vmatprep.mubr.f32.mxu0 0.0
      %v792 = vand.u32 %v234, 4294901760
      %v793 = vsub.f32 %v234, %v792
      %794 = vmatmul.mubr.f32.gmra.mrb[0].mxu0 %v793
      %v795 = vpop.f32.mrb[0].mxu0
      %v796 = vadd.f32 %v619, %v795
      %v797 = vpop.f32.mrb[0].mxu0
      %798 = vmatprep.mubr.f32.mxu0 0.0
      %v799 = vand.u32 %v237, 4294901760
      %v800 = vsub.f32 %v237, %v799
      %801 = vmatmul.mubr.f32.gmra.mrb[0].mxu0 %v800
      %v802 = vpop.f32.mrb[0].mxu0
      %v803 = vadd.f32 %v625, %v802
      %v804 = vpop.f32.mrb[0].mxu0
      %805 = vmatprep.mubr.f32.mxu0 0.0
      %v806 = vand.u32 %v240, 4294901760
      %v807 = vsub.f32 %v240, %v806
      %808 = vmatmul.mubr.f32.gmra.mrb[0].mxu0 %v807
      %v809 = vpop.f32.mrb[0].mxu0
      %v810 = vadd.f32 %v631, %v809
      %v811 = vpop.f32.mrb[0].mxu0
      %812 = vmatprep.mubr.f32.mxu0 0.0
      %v813 = vand.u32 %v243, 4294901760
      %v814 = vsub.f32 %v243, %v813
      %815 = vmatmul.mubr.f32.gmra.mrb[0].mxu0 %v814
      %v816 = vpop.f32.mrb[0].mxu0
      %v817 = vadd.f32 %v637, %v816
      %v818 = vpop.f32.mrb[0].mxu0
      %819 = vmatprep.mubr.f32.mxu0 0.0
      %v820 = vand.u32 %v246, 4294901760
      %v821 = vsub.f32 %v246, %v820
      %822 = vmatmul.mubr.f32.gmra.mrb[0].mxu0 %v821
      %v823 = vpop.f32.mrb[0].mxu0
      %v824 = vadd.f32 %v643, %v823
      %v825 = vpop.f32.mrb[0].mxu0
      %826 = vdwg.mxu0
      %827 = vmatprep.subr.mxu0 0.0
      %v828 = vand.u32 %v190, 4294901760
      %829 = vmatpush1.msra.mxu0 %v828
      %830 = vmatprep.subr.mxu0 0.0
      %v831 = vand.u32 %v191, 4294901760
      %832 = vmatpush1.msra.mxu0 %v831
      %833 = vmatprep.subr.mxu0 0.0
      %834 = vmatpush1.msra.mxu0 0.0
      %835 = vmatprep.subr.mxu0 0.0
      %836 = vmatpush1.msra.mxu0 0.0
      %837 = vmatprep.subr.mxu0 0.0
      %838 = vmatpush1.msra.mxu0 0.0
      %839 = vmatprep.subr.mxu0 0.0
      %840 = vmatpush1.msra.mxu0 0.0
      %841 = vmatprep.subr.mxu0 0.0
      %842 = vmatpush1.msra.mxu0 0.0
      %843 = vmatprep.subr.mxu0 0.0
      %844 = vmatpush1.msra.mxu0 0.0
      %845 = vmatprep.subr.mxu0 0.0
      %846 = vmatpush1.msra.mxu0 0.0
      %847 = vmatprep.subr.mxu0 0.0
      %848 = vmatpush1.msra.mxu0 0.0
      %849 = vmatprep.subr.mxu0 0.0
      %850 = vmatpush1.msra.mxu0 0.0
      %851 = vmatprep.subr.mxu0 0.0
      %852 = vmatpush1.msra.mxu0 0.0
      %853 = vmatprep.subr.mxu0 0.0
      %854 = vmatpush1.msra.mxu0 0.0
      %855 = vmatprep.subr.mxu0 0.0
      %856 = vmatpush1.msra.mxu0 0.0
      %857 = vmatprep.subr.mxu0 0.0
      %858 = vmatpush1.msra.mxu0 0.0
      %859 = vmatprep.subr.mxu0 0.0
      %860 = vmatpush1.msra.mxu0 0.0
      %861 = vmatprep.subr.mxu0 0.0
      %862 = vmatpush1.msra.mxu0 0.0
      %863 = vmatprep.subr.mxu0 0.0
      %864 = vmatpush1.msra.mxu0 0.0
      %865 = vmatprep.subr.mxu0 0.0
      %866 = vmatpush1.msra.mxu0 0.0
      %867 = vmatprep.subr.mxu0 0.0
      %868 = vmatpush1.msra.mxu0 0.0
      %869 = vmatprep.subr.mxu0 0.0
      %870 = vmatpush1.msra.mxu0 0.0
      %871 = vmatprep.subr.mxu0 0.0
      %872 = vmatpush1.msra.mxu0 0.0
      %873 = vmatprep.subr.mxu0 0.0
      %874 = vmatpush1.msra.mxu0 0.0
      %875 = vmatprep.subr.mxu0 0.0
      %876 = vmatpush1.msra.mxu0 0.0
      %877 = vmatprep.subr.mxu0 0.0
      %878 = vmatpush1.msra.mxu0 0.0
      %879 = vmatprep.subr.mxu0 0.0
      %880 = vmatpush1.msra.mxu0 0.0
      %881 = vmatprep.subr.mxu0 0.0
      %882 = vmatpush1.msra.mxu0 0.0
      %883 = vmatprep.subr.mxu0 0.0
      %884 = vmatpush1.msra.mxu0 0.0
      %885 = vmatprep.subr.mxu0 0.0
      %886 = vmatpush1.msra.mxu0 0.0
      %887 = vmatprep.subr.mxu0 0.0
      %888 = vmatpush1.msra.mxu0 0.0
      %889 = vmatprep.subr.mxu0 0.0
      %890 = vmatpush1.msra.mxu0 0.0
      %891 = vmatprep.subr.mxu0 0.0
      %892 = vmatpush1.msra.mxu0 0.0
      %893 = vmatprep.mubr.f32.mxu0 0.0
      %v894 = vand.u32 %v201, 4294901760
      %v895 = vsub.f32 %v201, %v894
      %v896 = vand.u32 %v895, 4294901760
      %897 = vmatmul.mubr.f32.gmra.mrb[0].mxu0 %v896
      %v898 = vpop.f32.mrb[0].mxu0
      %v899 = vadd.f32 %v719, %v898
      %v900 = vpop.f32.mrb[0].mxu0
      %901 = vmatprep.mubr.f32.mxu0 0.0
      %v902 = vand.u32 %v204, 4294901760
      %v903 = vsub.f32 %v204, %v902
      %v904 = vand.u32 %v903, 4294901760
      %905 = vmatmul.mubr.f32.gmra.mrb[0].mxu0 %v904
      %v906 = vpop.f32.mrb[0].mxu0
      %v907 = vadd.f32 %v726, %v906
      %v908 = vpop.f32.mrb[0].mxu0
      %909 = vmatprep.mubr.f32.mxu0 0.0
      %v910 = vand.u32 %v207, 4294901760
      %v911 = vsub.f32 %v207, %v910
      %v912 = vand.u32 %v911, 4294901760
      %913 = vmatmul.mubr.f32.gmra.mrb[0].mxu0 %v912
      %v914 = vpop.f32.mrb[0].mxu0
      %v915 = vadd.f32 %v733, %v914
      %v916 = vpop.f32.mrb[0].mxu0
      %917 = vmatprep.mubr.f32.mxu0 0.0
      %v918 = vand.u32 %v210, 4294901760
      %v919 = vsub.f32 %v210, %v918
      %v920 = vand.u32 %v919, 4294901760
      %921 = vmatmul.mubr.f32.gmra.mrb[0].mxu0 %v920
      %v922 = vpop.f32.mrb[0].mxu0
      %v923 = vadd.f32 %v740, %v922
      %v924 = vpop.f32.mrb[0].mxu0
      %925 = vmatprep.mubr.f32.mxu0 0.0
      %v926 = vand.u32 %v213, 4294901760
      %v927 = vsub.f32 %v213, %v926
      %v928 = vand.u32 %v927, 4294901760
      %929 = vmatmul.mubr.f32.gmra.mrb[0].mxu0 %v928
      %v930 = vpop.f32.mrb[0].mxu0
      %v931 = vadd.f32 %v747, %v930
      %v932 = vpop.f32.mrb[0].mxu0
      %933 = vmatprep.mubr.f32.mxu0 0.0
      %v934 = vand.u32 %v216, 4294901760
      %v935 = vsub.f32 %v216, %v934
      %v936 = vand.u32 %v935, 4294901760
      %937 = vmatmul.mubr.f32.gmra.mrb[0].mxu0 %v936
      %v938 = vpop.f32.mrb[0].mxu0
      %v939 = vadd.f32 %v754, %v938
      %v940 = vpop.f32.mrb[0].mxu0
      %941 = vmatprep.mubr.f32.mxu0 0.0
      %v942 = vand.u32 %v219, 4294901760
      %v943 = vsub.f32 %v219, %v942
      %v944 = vand.u32 %v943, 4294901760
      %945 = vmatmul.mubr.f32.gmra.mrb[0].mxu0 %v944
      %v946 = vpop.f32.mrb[0].mxu0
      %v947 = vadd.f32 %v761, %v946
      %v948 = vpop.f32.mrb[0].mxu0
      %949 = vmatprep.mubr.f32.mxu0 0.0
      %v950 = vand.u32 %v222, 4294901760
      %v951 = vsub.f32 %v222, %v950
      %v952 = vand.u32 %v951, 4294901760
      %953 = vmatmul.mubr.f32.gmra.mrb[0].mxu0 %v952
      %v954 = vpop.f32.mrb[0].mxu0
      %v955 = vadd.f32 %v768, %v954
      %v956 = vpop.f32.mrb[0].mxu0
      %957 = vmatprep.mubr.f32.mxu0 0.0
      %v958 = vand.u32 %v225, 4294901760
      %v959 = vsub.f32 %v225, %v958
      %v960 = vand.u32 %v959, 4294901760
      %961 = vmatmul.mubr.f32.gmra.mrb[0].mxu0 %v960
      %v962 = vpop.f32.mrb[0].mxu0
      %v963 = vadd.f32 %v775, %v962
      %v964 = vpop.f32.mrb[0].mxu0
      %965 = vmatprep.mubr.f32.mxu0 0.0
      %v966 = vand.u32 %v228, 4294901760
      %v967 = vsub.f32 %v228, %v966
      %v968 = vand.u32 %v967, 4294901760
      %969 = vmatmul.mubr.f32.gmra.mrb[0].mxu0 %v968
      %v970 = vpop.f32.mrb[0].mxu0
      %v971 = vadd.f32 %v782, %v970
      %v972 = vpop.f32.mrb[0].mxu0
      %973 = vmatprep.mubr.f32.mxu0 0.0
      %v974 = vand.u32 %v231, 4294901760
      %v975 = vsub.f32 %v231, %v974
      %v976 = vand.u32 %v975, 4294901760
      %977 = vmatmul.mubr.f32.gmra.mrb[0].mxu0 %v976
      %v978 = vpop.f32.mrb[0].mxu0
      %v979 = vadd.f32 %v789, %v978
      %v980 = vpop.f32.mrb[0].mxu0
      %981 = vmatprep.mubr.f32.mxu0 0.0
      %v982 = vand.u32 %v234, 4294901760
      %v983 = vsub.f32 %v234, %v982
      %v984 = vand.u32 %v983, 4294901760
      %985 = vmatmul.mubr.f32.gmra.mrb[0].mxu0 %v984
      %v986 = vpop.f32.mrb[0].mxu0
      %v987 = vadd.f32 %v796, %v986
      %v988 = vpop.f32.mrb[0].mxu0
      %989 = vmatprep.mubr.f32.mxu0 0.0
      %v990 = vand.u32 %v237, 4294901760
      %v991 = vsub.f32 %v237, %v990
      %v992 = vand.u32 %v991, 4294901760
      %993 = vmatmul.mubr.f32.gmra.mrb[0].mxu0 %v992
      %v994 = vpop.f32.mrb[0].mxu0
      %v995 = vadd.f32 %v803, %v994
      %v996 = vpop.f32.mrb[0].mxu0
      %997 = vmatprep.mubr.f32.mxu0 0.0
      %v998 = vand.u32 %v240, 4294901760
      %v999 = vsub.f32 %v240, %v998
      %v1000 = vand.u32 %v999, 4294901760
      %1001 = vmatmul.mubr.f32.gmra.mrb[0].mxu0 %v1000
      %v1002 = vpop.f32.mrb[0].mxu0
      %v1003 = vadd.f32 %v810, %v1002
      %v1004 = vpop.f32.mrb[0].mxu0
      %1005 = vmatprep.mubr.f32.mxu0 0.0
      %v1006 = vand.u32 %v243, 4294901760
      %v1007 = vsub.f32 %v243, %v1006
      %v1008 = vand.u32 %v1007, 4294901760
      %1009 = vmatmul.mubr.f32.gmra.mrb[0].mxu0 %v1008
      %v1010 = vpop.f32.mrb[0].mxu0
      %v1011 = vadd.f32 %v817, %v1010
      %v1012 = vpop.f32.mrb[0].mxu0
      %1013 = vmatprep.mubr.f32.mxu0 0.0
      %v1014 = vand.u32 %v246, 4294901760
      %v1015 = vsub.f32 %v246, %v1014
      %v1016 = vand.u32 %v1015, 4294901760
      %1017 = vmatmul.mubr.f32.gmra.mrb[0].mxu0 %v1016
      %v1018 = vpop.f32.mrb[0].mxu0
      %v1019 = vadd.f32 %v824, %v1018
      %v1020 = vpop.f32.mrb[0].mxu0
      %1021 = vdwg.mxu0
      %1022 = vmatprep.subr.mxu0 0.0
      %v1023 = vand.u32 %v190, 4294901760
      %v1024 = vsub.f32 %v190, %v1023
      %v1025 = vand.u32 %v1024, 4294901760
      %1026 = vmatpush1.msra.mxu0 %v1025
      %1027 = vmatprep.subr.mxu0 0.0
      %v1028 = vand.u32 %v191, 4294901760
      %v1029 = vsub.f32 %v191, %v1028
      %v1030 = vand.u32 %v1029, 4294901760
      %1031 = vmatpush1.msra.mxu0 %v1030
      %1032 = vmatprep.subr.mxu0 0.0
      %1033 = vmatpush1.msra.mxu0 0.0
      %1034 = vmatprep.subr.mxu0 0.0
      %1035 = vmatpush1.msra.mxu0 0.0
      %1036 = vmatprep.subr.mxu0 0.0
      %1037 = vmatpush1.msra.mxu0 0.0
      %1038 = vmatprep.subr.mxu0 0.0
      %1039 = vmatpush1.msra.mxu0 0.0
      %1040 = vmatprep.subr.mxu0 0.0
      %1041 = vmatpush1.msra.mxu0 0.0
      %1042 = vmatprep.subr.mxu0 0.0
      %1043 = vmatpush1.msra.mxu0 0.0
      %1044 = vmatprep.subr.mxu0 0.0
      %1045 = vmatpush1.msra.mxu0 0.0
      %1046 = vmatprep.subr.mxu0 0.0
      %1047 = vmatpush1.msra.mxu0 0.0
      %1048 = vmatprep.subr.mxu0 0.0
      %1049 = vmatpush1.msra.mxu0 0.0
      %1050 = vmatprep.subr.mxu0 0.0
      %1051 = vmatpush1.msra.mxu0 0.0
      %1052 = vmatprep.subr.mxu0 0.0
      %1053 = vmatpush1.msra.mxu0 0.0
      %1054 = vmatprep.subr.mxu0 0.0
      %1055 = vmatpush1.msra.mxu0 0.0
      %1056 = vmatprep.subr.mxu0 0.0
      %1057 = vmatpush1.msra.mxu0 0.0
      %1058 = vmatprep.subr.mxu0 0.0
      %1059 = vmatpush1.msra.mxu0 0.0
      %1060 = vmatprep.subr.mxu0 0.0
      %1061 = vmatpush1.msra.mxu0 0.0
      %1062 = vmatprep.subr.mxu0 0.0
      %1063 = vmatpush1.msra.mxu0 0.0
      %1064 = vmatprep.subr.mxu0 0.0
      %1065 = vmatpush1.msra.mxu0 0.0
      %1066 = vmatprep.subr.mxu0 0.0
      %1067 = vmatpush1.msra.mxu0 0.0
      %1068 = vmatprep.subr.mxu0 0.0
      %1069 = vmatpush1.msra.mxu0 0.0
      %1070 = vmatprep.subr.mxu0 0.0
      %1071 = vmatpush1.msra.mxu0 0.0
      %1072 = vmatprep.subr.mxu0 0.0
      %1073 = vmatpush1.msra.mxu0 0.0
      %1074 = vmatprep.subr.mxu0 0.0
      %1075 = vmatpush1.msra.mxu0 0.0
      %1076 = vmatprep.subr.mxu0 0.0
      %1077 = vmatpush1.msra.mxu0 0.0
      %1078 = vmatprep.subr.mxu0 0.0
      %1079 = vmatpush1.msra.mxu0 0.0
      %1080 = vmatprep.subr.mxu0 0.0
      %1081 = vmatpush1.msra.mxu0 0.0
      %1082 = vmatprep.subr.mxu0 0.0
      %1083 = vmatpush1.msra.mxu0 0.0
      %1084 = vmatprep.subr.mxu0 0.0
      %1085 = vmatpush1.msra.mxu0 0.0
      %1086 = vmatprep.subr.mxu0 0.0
      %1087 = vmatpush1.msra.mxu0 0.0
      %1088 = vmatprep.subr.mxu0 0.0
      %1089 = vmatpush1.msra.mxu0 0.0
      %1090 = vmatprep.subr.mxu0 0.0
      %1091 = vmatpush1.msra.mxu0 0.0
      %1092 = vmatprep.mubr.f32.mxu0 0.0
      %v1093 = vand.u32 %v201, 4294901760
      %1094 = vmatmul.mubr.f32.gmra.mrb[0].mxu0 %v1093
      %v1095 = vpop.f32.mrb[0].mxu0
      %v1096 = vadd.f32 %v899, %v1095
      %v1097 = vpop.f32.mrb[0].mxu0
      %1098 = vmatprep.mubr.f32.mxu0 0.0
      %v1099 = vand.u32 %v204, 4294901760
      %1100 = vmatmul.mubr.f32.gmra.mrb[0].mxu0 %v1099
      %v1101 = vpop.f32.mrb[0].mxu0
      %v1102 = vadd.f32 %v907, %v1101
      %v1103 = vpop.f32.mrb[0].mxu0
      %1104 = vmatprep.mubr.f32.mxu0 0.0
      %v1105 = vand.u32 %v207, 4294901760
      %1106 = vmatmul.mubr.f32.gmra.mrb[0].mxu0 %v1105
      %v1107 = vpop.f32.mrb[0].mxu0
      %v1108 = vadd.f32 %v915, %v1107
      %v1109 = vpop.f32.mrb[0].mxu0
      %1110 = vmatprep.mubr.f32.mxu0 0.0
      %v1111 = vand.u32 %v210, 4294901760
      %1112 = vmatmul.mubr.f32.gmra.mrb[0].mxu0 %v1111
      %v1113 = vpop.f32.mrb[0].mxu0
      %v1114 = vadd.f32 %v923, %v1113
      %v1115 = vpop.f32.mrb[0].mxu0
      %1116 = vmatprep.mubr.f32.mxu0 0.0
      %v1117 = vand.u32 %v213, 4294901760
      %1118 = vmatmul.mubr.f32.gmra.mrb[0].mxu0 %v1117
      %v1119 = vpop.f32.mrb[0].mxu0
      %v1120 = vadd.f32 %v931, %v1119
      %v1121 = vpop.f32.mrb[0].mxu0
      %1122 = vmatprep.mubr.f32.mxu0 0.0
      %v1123 = vand.u32 %v216, 4294901760
      %1124 = vmatmul.mubr.f32.gmra.mrb[0].mxu0 %v1123
      %v1125 = vpop.f32.mrb[0].mxu0
      %v1126 = vadd.f32 %v939, %v1125
      %v1127 = vpop.f32.mrb[0].mxu0
      %1128 = vmatprep.mubr.f32.mxu0 0.0
      %v1129 = vand.u32 %v219, 4294901760
      %1130 = vmatmul.mubr.f32.gmra.mrb[0].mxu0 %v1129
      %v1131 = vpop.f32.mrb[0].mxu0
      %v1132 = vadd.f32 %v947, %v1131
      %v1133 = vpop.f32.mrb[0].mxu0
      %1134 = vmatprep.mubr.f32.mxu0 0.0
      %v1135 = vand.u32 %v222, 4294901760
      %1136 = vmatmul.mubr.f32.gmra.mrb[0].mxu0 %v1135
      %v1137 = vpop.f32.mrb[0].mxu0
      %v1138 = vadd.f32 %v955, %v1137
      %v1139 = vpop.f32.mrb[0].mxu0
      %1140 = vmatprep.mubr.f32.mxu0 0.0
      %v1141 = vand.u32 %v225, 4294901760
      %1142 = vmatmul.mubr.f32.gmra.mrb[0].mxu0 %v1141
      %v1143 = vpop.f32.mrb[0].mxu0
      %v1144 = vadd.f32 %v963, %v1143
      %v1145 = vpop.f32.mrb[0].mxu0
      %1146 = vmatprep.mubr.f32.mxu0 0.0
      %v1147 = vand.u32 %v228, 4294901760
      %1148 = vmatmul.mubr.f32.gmra.mrb[0].mxu0 %v1147
      %v1149 = vpop.f32.mrb[0].mxu0
      %v1150 = vadd.f32 %v971, %v1149
      %v1151 = vpop.f32.mrb[0].mxu0
      %1152 = vmatprep.mubr.f32.mxu0 0.0
      %v1153 = vand.u32 %v231, 4294901760
      %1154 = vmatmul.mubr.f32.gmra.mrb[0].mxu0 %v1153
      %v1155 = vpop.f32.mrb[0].mxu0
      %v1156 = vadd.f32 %v979, %v1155
      %v1157 = vpop.f32.mrb[0].mxu0
      %1158 = vmatprep.mubr.f32.mxu0 0.0
      %v1159 = vand.u32 %v234, 4294901760
      %1160 = vmatmul.mubr.f32.gmra.mrb[0].mxu0 %v1159
      %v1161 = vpop.f32.mrb[0].mxu0
      %v1162 = vadd.f32 %v987, %v1161
      %v1163 = vpop.f32.mrb[0].mxu0
      %1164 = vmatprep.mubr.f32.mxu0 0.0
      %v1165 = vand.u32 %v237, 4294901760
      %1166 = vmatmul.mubr.f32.gmra.mrb[0].mxu0 %v1165
      %v1167 = vpop.f32.mrb[0].mxu0
      %v1168 = vadd.f32 %v995, %v1167
      %v1169 = vpop.f32.mrb[0].mxu0
      %1170 = vmatprep.mubr.f32.mxu0 0.0
      %v1171 = vand.u32 %v240, 4294901760
      %1172 = vmatmul.mubr.f32.gmra.mrb[0].mxu0 %v1171
      %v1173 = vpop.f32.mrb[0].mxu0
      %v1174 = vadd.f32 %v1003, %v1173
      %v1175 = vpop.f32.mrb[0].mxu0
      %1176 = vmatprep.mubr.f32.mxu0 0.0
      %v1177 = vand.u32 %v243, 4294901760
      %1178 = vmatmul.mubr.f32.gmra.mrb[0].mxu0 %v1177
      %v1179 = vpop.f32.mrb[0].mxu0
      %v1180 = vadd.f32 %v1011, %v1179
      %v1181 = vpop.f32.mrb[0].mxu0
      %1182 = vmatprep.mubr.f32.mxu0 0.0
      %v1183 = vand.u32 %v246, 4294901760
      %1184 = vmatmul.mubr.f32.gmra.mrb[0].mxu0 %v1183
      %v1185 = vpop.f32.mrb[0].mxu0
      %v1186 = vadd.f32 %v1019, %v1185
      %v1187 = vpop.f32.mrb[0].mxu0
      %1188 = vdwg.mxu0
      %1189 = vmatprep.subr.mxu0 0.0
      %v1190 = vand.u32 %v190, 4294901760
      %1191 = vmatpush1.msra.mxu0 %v1190
      %1192 = vmatprep.subr.mxu0 0.0
      %v1193 = vand.u32 %v191, 4294901760
      %1194 = vmatpush1.msra.mxu0 %v1193
      %1195 = vmatprep.subr.mxu0 0.0
      %1196 = vmatpush1.msra.mxu0 0.0
      %1197 = vmatprep.subr.mxu0 0.0
      %1198 = vmatpush1.msra.mxu0 0.0
      %1199 = vmatprep.subr.mxu0 0.0
      %1200 = vmatpush1.msra.mxu0 0.0
      %1201 = vmatprep.subr.mxu0 0.0
      %1202 = vmatpush1.msra.mxu0 0.0
      %1203 = vmatprep.subr.mxu0 0.0
      %1204 = vmatpush1.msra.mxu0 0.0
      %1205 = vmatprep.subr.mxu0 0.0
      %1206 = vmatpush1.msra.mxu0 0.0
      %1207 = vmatprep.subr.mxu0 0.0
      %1208 = vmatpush1.msra.mxu0 0.0
      %1209 = vmatprep.subr.mxu0 0.0
      %1210 = vmatpush1.msra.mxu0 0.0
      %1211 = vmatprep.subr.mxu0 0.0
      %1212 = vmatpush1.msra.mxu0 0.0
      %1213 = vmatprep.subr.mxu0 0.0
      %1214 = vmatpush1.msra.mxu0 0.0
      %1215 = vmatprep.subr.mxu0 0.0
      %1216 = vmatpush1.msra.mxu0 0.0
      %1217 = vmatprep.subr.mxu0 0.0
      %1218 = vmatpush1.msra.mxu0 0.0
      %1219 = vmatprep.subr.mxu0 0.0
      %1220 = vmatpush1.msra.mxu0 0.0
      %1221 = vmatprep.subr.mxu0 0.0
      %1222 = vmatpush1.msra.mxu0 0.0
      %1223 = vmatprep.subr.mxu0 0.0
      %1224 = vmatpush1.msra.mxu0 0.0
      %1225 = vmatprep.subr.mxu0 0.0
      %1226 = vmatpush1.msra.mxu0 0.0
      %1227 = vmatprep.subr.mxu0 0.0
      %1228 = vmatpush1.msra.mxu0 0.0
      %1229 = vmatprep.subr.mxu0 0.0
      %1230 = vmatpush1.msra.mxu0 0.0
      %1231 = vmatprep.subr.mxu0 0.0
      %1232 = vmatpush1.msra.mxu0 0.0
      %1233 = vmatprep.subr.mxu0 0.0
      %1234 = vmatpush1.msra.mxu0 0.0
      %1235 = vmatprep.subr.mxu0 0.0
      %1236 = vmatpush1.msra.mxu0 0.0
      %1237 = vmatprep.subr.mxu0 0.0
      %1238 = vmatpush1.msra.mxu0 0.0
      %1239 = vmatprep.subr.mxu0 0.0
      %1240 = vmatpush1.msra.mxu0 0.0
      %1241 = vmatprep.subr.mxu0 0.0
      %1242 = vmatpush1.msra.mxu0 0.0
      %1243 = vmatprep.subr.mxu0 0.0
      %1244 = vmatpush1.msra.mxu0 0.0
      %1245 = vmatprep.subr.mxu0 0.0
      %1246 = vmatpush1.msra.mxu0 0.0
      %1247 = vmatprep.subr.mxu0 0.0
      %1248 = vmatpush1.msra.mxu0 0.0
      %1249 = vmatprep.subr.mxu0 0.0
      %1250 = vmatpush1.msra.mxu0 0.0
      %1251 = vmatprep.subr.mxu0 0.0
      %1252 = vmatpush1.msra.mxu0 0.0
      %1253 = vmatprep.subr.mxu0 0.0
      %1254 = vmatpush1.msra.mxu0 0.0
      %1255 = vmatprep.mubr.f32.mxu0 0.0
      %v1256 = vand.u32 %v201, 4294901760
      %1257 = vmatmul.mubr.f32.gmra.mrb[0].mxu0 %v1256
      %v1258 = vpop.f32.mrb[0].mxu0
      %v1259 = vadd.f32 %v1096, %v1258
      %v1260 = vpop.f32.mrb[0].mxu0
      %1261 = vmatprep.mubr.f32.mxu0 0.0
      %v1262 = vand.u32 %v204, 4294901760
      %1263 = vmatmul.mubr.f32.gmra.mrb[0].mxu0 %v1262
      %v1264 = vpop.f32.mrb[0].mxu0
      %v1265 = vadd.f32 %v1102, %v1264
      %v1266 = vpop.f32.mrb[0].mxu0
      %1267 = vmatprep.mubr.f32.mxu0 0.0
      %v1268 = vand.u32 %v207, 4294901760
      %1269 = vmatmul.mubr.f32.gmra.mrb[0].mxu0 %v1268
      %v1270 = vpop.f32.mrb[0].mxu0
      %v1271 = vadd.f32 %v1108, %v1270
      %v1272 = vpop.f32.mrb[0].mxu0
      %1273 = vmatprep.mubr.f32.mxu0 0.0
      %v1274 = vand.u32 %v210, 4294901760
      %1275 = vmatmul.mubr.f32.gmra.mrb[0].mxu0 %v1274
      %v1276 = vpop.f32.mrb[0].mxu0
      %v1277 = vadd.f32 %v1114, %v1276
      %v1278 = vpop.f32.mrb[0].mxu0
      %1279 = vmatprep.mubr.f32.mxu0 0.0
      %v1280 = vand.u32 %v213, 4294901760
      %1281 = vmatmul.mubr.f32.gmra.mrb[0].mxu0 %v1280
      %v1282 = vpop.f32.mrb[0].mxu0
      %v1283 = vadd.f32 %v1120, %v1282
      %v1284 = vpop.f32.mrb[0].mxu0
      %1285 = vmatprep.mubr.f32.mxu0 0.0
      %v1286 = vand.u32 %v216, 4294901760
      %1287 = vmatmul.mubr.f32.gmra.mrb[0].mxu0 %v1286
      %v1288 = vpop.f32.mrb[0].mxu0
      %v1289 = vadd.f32 %v1126, %v1288
      %v1290 = vpop.f32.mrb[0].mxu0
      %1291 = vmatprep.mubr.f32.mxu0 0.0
      %v1292 = vand.u32 %v219, 4294901760
      %1293 = vmatmul.mubr.f32.gmra.mrb[0].mxu0 %v1292
      %v1294 = vpop.f32.mrb[0].mxu0
      %v1295 = vadd.f32 %v1132, %v1294
      %v1296 = vpop.f32.mrb[0].mxu0
      %1297 = vmatprep.mubr.f32.mxu0 0.0
      %v1298 = vand.u32 %v222, 4294901760
      %1299 = vmatmul.mubr.f32.gmra.mrb[0].mxu0 %v1298
      %v1300 = vpop.f32.mrb[0].mxu0
      %v1301 = vadd.f32 %v1138, %v1300
      %v1302 = vpop.f32.mrb[0].mxu0
      %1303 = vmatprep.mubr.f32.mxu0 0.0
      %v1304 = vand.u32 %v225, 4294901760
      %1305 = vmatmul.mubr.f32.gmra.mrb[0].mxu0 %v1304
      %v1306 = vpop.f32.mrb[0].mxu0
      %v1307 = vadd.f32 %v1144, %v1306
      %v1308 = vpop.f32.mrb[0].mxu0
      %1309 = vmatprep.mubr.f32.mxu0 0.0
      %v1310 = vand.u32 %v228, 4294901760
      %1311 = vmatmul.mubr.f32.gmra.mrb[0].mxu0 %v1310
      %v1312 = vpop.f32.mrb[0].mxu0
      %v1313 = vadd.f32 %v1150, %v1312
      %v1314 = vpop.f32.mrb[0].mxu0
      %1315 = vmatprep.mubr.f32.mxu0 0.0
      %v1316 = vand.u32 %v231, 4294901760
      %1317 = vmatmul.mubr.f32.gmra.mrb[0].mxu0 %v1316
      %v1318 = vpop.f32.mrb[0].mxu0
      %v1319 = vadd.f32 %v1156, %v1318
      %v1320 = vpop.f32.mrb[0].mxu0
      %1321 = vmatprep.mubr.f32.mxu0 0.0
      %v1322 = vand.u32 %v234, 4294901760
      %1323 = vmatmul.mubr.f32.gmra.mrb[0].mxu0 %v1322
      %v1324 = vpop.f32.mrb[0].mxu0
      %v1325 = vadd.f32 %v1162, %v1324
      %v1326 = vpop.f32.mrb[0].mxu0
      %1327 = vmatprep.mubr.f32.mxu0 0.0
      %v1328 = vand.u32 %v237, 4294901760
      %1329 = vmatmul.mubr.f32.gmra.mrb[0].mxu0 %v1328
      %v1330 = vpop.f32.mrb[0].mxu0
      %v1331 = vadd.f32 %v1168, %v1330
      %v1332 = vpop.f32.mrb[0].mxu0
      %1333 = vmatprep.mubr.f32.mxu0 0.0
      %v1334 = vand.u32 %v240, 4294901760
      %1335 = vmatmul.mubr.f32.gmra.mrb[0].mxu0 %v1334
      %v1336 = vpop.f32.mrb[0].mxu0
      %v1337 = vadd.f32 %v1174, %v1336
      %v1338 = vpop.f32.mrb[0].mxu0
      %1339 = vmatprep.mubr.f32.mxu0 0.0
      %v1340 = vand.u32 %v243, 4294901760
      %1341 = vmatmul.mubr.f32.gmra.mrb[0].mxu0 %v1340
      %v1342 = vpop.f32.mrb[0].mxu0
      %v1343 = vadd.f32 %v1180, %v1342
      %v1344 = vpop.f32.mrb[0].mxu0
      %1345 = vmatprep.mubr.f32.mxu0 0.0
      %v1346 = vand.u32 %v246, 4294901760
      %1347 = vmatmul.mubr.f32.gmra.mrb[0].mxu0 %v1346
      %v1348 = vpop.f32.mrb[0].mxu0
      %v1349 = vadd.f32 %v1186, %v1348
      %v1350 = vpop.f32.mrb[0].mxu0
      %1351 = vdwg.mxu0
      %vm1352 = vcmask 654336
      %1353 = vst.msk [vmem:[%s172] sm:$0xff] %vm1352, %v1259
      %1354 = vst.msk [vmem:[%s172 + $0x8] sm:$0xff] %vm1352, %v1265
      %1355 = vst.msk [vmem:[%s172 + $0x10] sm:$0xff] %vm1352, %v1271
      %1356 = vst.msk [vmem:[%s172 + $0x18] sm:$0xff] %vm1352, %v1277
      %1357 = vst.msk [vmem:[%s172 + $0x20] sm:$0xff] %vm1352, %v1283
      %1358 = vst.msk [vmem:[%s172 + $0x28] sm:$0xff] %vm1352, %v1289
      %1359 = vst.msk [vmem:[%s172 + $0x30] sm:$0xff] %vm1352, %v1295
      %1360 = vst.msk [vmem:[%s172 + $0x38] sm:$0xff] %vm1352, %v1301
      %1361 = vst.msk [vmem:[%s172 + $0x40] sm:$0xff] %vm1352, %v1307
      %1362 = vst.msk [vmem:[%s172 + $0x48] sm:$0xff] %vm1352, %v1313
      %1363 = vst.msk [vmem:[%s172 + $0x50] sm:$0xff] %vm1352, %v1319
      %1364 = vst.msk [vmem:[%s172 + $0x58] sm:$0xff] %vm1352, %v1325
      %1365 = vst.msk [vmem:[%s172 + $0x60] sm:$0xff] %vm1352, %v1331
      %1366 = vst.msk [vmem:[%s172 + $0x68] sm:$0xff] %vm1352, %v1337
      %1367 = vst.msk [vmem:[%s172 + $0x70] sm:$0xff] %vm1352, %v1343
      %1368 = vst.msk [vmem:[%s172 + $0x78] sm:$0xff] %vm1352, %v1349
      %s1369 = smul.u32 16, %s14
      %p1370 = scmp.lt.s32.totalorder %s1369, 31
      %s1371 = scalar_select %p1370, %s1369, 31
      %s1372 = smul.addr %s1371, 8
      %s1373 = scalar_lea.vmem %s3, %s1372
      // Predicated region
      $region33: #{tpu_custom_call.1} parent=31 // pred_check
        %p1374 = pneg %p100
      $region34: #{tpu_custom_call.1} parent=31 // pred_check_branch
        %1376 = sbr.rel (%p1374) target = $region36
      $region35: #{tpu_custom_call.1} parent=31 // pred_region
        %s1377 = smul.u32 16, %s14
      $region36: #{tpu_custom_call.1} parent=31 // pred_fallthru
        _
    $region32: #{tpu_custom_call.1} parent=5 // pred_fallthru
      _
    %p1378 = scmp.le.s32.totalorder 2, %s9
    // Predicated region
    $region37: #{tpu_custom_call.1} parent=5 // pred_check
      %p1379 = pneg %p1378
    $region38: #{tpu_custom_call.1} parent=5 // pred_check_branch
      %1381 = sbr.rel (%p1379) target = $region40
    $region39: #{tpu_custom_call.1} parent=5 // pred_region
      %s1382 = ssub.s32 %s9, 2
      // Predicated region
      $region41: #{tpu_custom_call.1} parent=39 // pred_check
        %p1383 = pneg %p106
      $region42: #{tpu_custom_call.1} parent=39 // pred_check_branch
        %1385 = sbr.rel (%p1383) target = $region44
      $region43: #{tpu_custom_call.1} parent=39 // pred_region
        %s1386 = smul.u32 16, %s15
        %p1387 = scmp.lt.s32.totalorder %s1386, 31
        %s1388 = scalar_select %p1387, %s1386, 31
        %s1389 = smul.addr %s1388, 8
        %s1390 = scalar_lea.vmem %s3, %s1389
      $region44: #{tpu_custom_call.1} parent=39 // pred_fallthru
        _
    $region40: #{tpu_custom_call.1} parent=5 // pred_fallthru
      _
  $region6: #{tpu_custom_call.1} parent=0 // loop_footer
    %s13 = sadd.s32 1, %s9
  $region7: #{tpu_custom_call.1} parent=0 // loop_footer_branch
    %8 = sbr.rel target = $region3
  $region8: #{tpu_custom_call.1} parent=0 // loop_exit
    _

</llo_original>
